<compile_context>
chip_gen: v6e
topology: v6e:2x2x1
jax: 0.10.0
libtpu: 0.0.40
codegen_flags: <defaults>
</compile_context>

<pallas_src>
import functools

import jax
import jax.numpy as jnp
from jax.experimental import pallas as pl
from jax.experimental.pallas import tpu as pltpu


def _round_up(n, m):
    return ((n + m - 1) // m) * m


def _pad_to(a, shape):
    pads = [(0, t - s) for s, t in zip(a.shape, shape)]
    if all(p == (0, 0) for p in pads):
        return a
    return jnp.pad(a, pads)


def _pick_tile_b(B):
    """Batch tile: multiple of 8, capped at 256, >=2 grid steps when B allows."""
    b_pad = _round_up(B, 8)
    if b_pad <= 16:
        return b_pad
    # keep at least 2 parallel steps so both v7x TensorCores get work
    return min(256, _round_up(pl.cdiv(b_pad, 2), 8))


def np_encoder_kernel(x_ref, y_ref, w1x_ref, w1y_ref, b1_ref,
                      w2_ref, b2_ref, w3_ref, b3_ref, out_ref,
                      *, compute_dtype):
    cd = compute_dtype
    x = x_ref[...].astype(cd)
    y = y_ref[...].astype(cd)

    # Layer 1: Linear + ReLU  (concat folded into two dots on the split w1)
    h = (jnp.dot(x, w1x_ref[...].astype(cd), preferred_element_type=jnp.float32)
         + jnp.dot(y, w1y_ref[...].astype(cd), preferred_element_type=jnp.float32)
         + b1_ref[...])
    h = jnp.maximum(h, 0.0)                       # f32 elementwise (v5e-native)

    # Layer 2: Linear + ReLU
    h = jnp.dot(h.astype(cd), w2_ref[...].astype(cd),
                preferred_element_type=jnp.float32) + b2_ref[...]
    h = jnp.maximum(h, 0.0)

    # Layer 3: Linear (no activation)
    r = jnp.dot(h.astype(cd), w3_ref[...].astype(cd),
                preferred_element_type=jnp.float32) + b3_ref[...]
    out_ref[...] = r.astype(out_ref.dtype)


def np_encoder_forward(x, y_onehot, params, *, tile_b=None,
                       compute_dtype=jnp.bfloat16):
    """x: [B, input_dim], y_onehot: [B, output_dim_onehot] -> r: [B, r_dim]."""
    w1, b1, w2, b2, w3, b3 = (params["w1"], params["b1"], params["w2"],
                              params["b2"], params["w3"], params["b3"])
    B, input_dim = x.shape
    _, od = y_onehot.shape
    hidden = w1.shape[1]
    r_dim = w3.shape[1]
    assert w1.shape[0] == input_dim + od

    # Lane-pad feature dims to 128 (zero lanes contribute exactly 0 end-to-end).
    hidden_p = _round_up(hidden, 128)
    r_p = _round_up(r_dim, 128)

    w1x = _pad_to(w1[:input_dim], (input_dim, hidden_p)).astype(compute_dtype)
    w1y = _pad_to(w1[input_dim:], (od, hidden_p)).astype(compute_dtype)
    b1p = _pad_to(b1, (1, hidden_p)).astype(jnp.float32)
    w2p = _pad_to(w2, (hidden_p, hidden_p)).astype(compute_dtype)
    b2p = _pad_to(b2, (1, hidden_p)).astype(jnp.float32)
    w3p = _pad_to(w3, (hidden_p, r_p)).astype(compute_dtype)
    b3p = _pad_to(b3, (1, r_p)).astype(jnp.float32)

    if tile_b is None:
        tile_b = _pick_tile_b(B)
    tile_b = _round_up(tile_b, 8)
    b_pad = _round_up(B, tile_b)
    xp = _pad_to(x, (b_pad, input_dim))
    yp = _pad_to(y_onehot, (b_pad, od))

    grid = (b_pad // tile_b,)
    full = lambda i: (0, 0)  # weights/biases: same full block every step
    kernel = functools.partial(np_encoder_kernel, compute_dtype=compute_dtype)

    # TODO(synk): at real hidden sizes, mark weight/bias specs single-buffered
    # (pipeline_mode=pl.Buffered(1)) to cut resident VMEM on v7x's 64 MiB budget.
    out = pl.pallas_call(
        kernel,
        out_shape=jax.ShapeDtypeStruct((b_pad, r_p), x.dtype),
        grid_spec=pltpu.PrefetchScalarGridSpec(
            num_scalar_prefetch=0,
            grid=grid,
            in_specs=[
                pl.BlockSpec((tile_b, input_dim), lambda i: (i, 0)),  # x tile
                pl.BlockSpec((tile_b, od), lambda i: (i, 0)),         # y tile
                pl.BlockSpec((input_dim, hidden_p), full),            # w1[:in]
                pl.BlockSpec((od, hidden_p), full),                   # w1[in:]
                pl.BlockSpec((1, hidden_p), full),                    # b1
                pl.BlockSpec((hidden_p, hidden_p), full),             # w2
                pl.BlockSpec((1, hidden_p), full),                    # b2
                pl.BlockSpec((hidden_p, r_p), full),                  # w3
                pl.BlockSpec((1, r_p), full),                         # b3
            ],
            out_specs=pl.BlockSpec((tile_b, r_p), lambda i: (i, 0)),
        ),
        compiler_params=pltpu.CompilerParams(
            dimension_semantics=("parallel",)),
    )(xp, yp, w1x, w1y, b1p, w2p, b2p, w3p, b3p)

    return out[:B, :r_dim]


def init_params(key, input_dim, output_dim_onehot, hidden_dim, r_dim,
                dtype=jnp.float32):
    """Deterministic synthetic params (shapes match the PyTorch module)."""
    d_cat = input_dim + output_dim_onehot
    k = jax.random.split(key, 6)
    # Stored as [in, out] (transposed relative to torch's [out, in]).
    w1 = jax.random.normal(k[0], (d_cat, hidden_dim), dtype) * 0.1
    b1 = jax.random.normal(k[1], (1, hidden_dim), dtype) * 0.1
    w2 = jax.random.normal(k[2], (hidden_dim, hidden_dim), dtype) * 0.1
    b2 = jax.random.normal(k[3], (1, hidden_dim), dtype) * 0.1
    w3 = jax.random.normal(k[4], (hidden_dim, r_dim), dtype) * 0.1
    b3 = jax.random.normal(k[5], (1, r_dim), dtype) * 0.1
    return dict(w1=w1, b1=b1, w2=w2, b2=b2, w3=w3, b3=b3)


def np_encoder_ref(x, y_onehot, params):
    """Pure-JAX reference of the PyTorch forward."""
    xy = jnp.concatenate([x, y_onehot], axis=-1)
    h = jnp.maximum(xy @ params["w1"] + params["b1"], 0.0)
    h = jnp.maximum(h @ params["w2"] + params["b2"], 0.0)
    return h @ params["w3"] + params["b3"]


if __name__ == "__main__":
    # Small shapes consistent with the module's forward:
    #   x: [B, input_dim], y_onehot: [B, output_dim_onehot]
    B, input_dim, output_dim_onehot, hidden_dim, r_dim = 256, 16, 10, 64, 32

    key = jax.random.PRNGKey(0)
    kx, ky, kp = jax.random.split(key, 3)

    x = jax.random.normal(kx, (B, input_dim), jnp.float32)
    labels = jax.random.randint(ky, (B,), 0, output_dim_onehot)
    y_onehot = jax.nn.one_hot(labels, output_dim_onehot, dtype=jnp.float32)

    params = init_params(kp, input_dim, output_dim_onehot, hidden_dim, r_dim)
    ref = np_encoder_ref(x, y_onehot, params)

    # Exact-semantics path (f32 MXU operands).
    out_f32 = jax.block_until_ready(
        np_encoder_forward(x, y_onehot, params, compute_dtype=jnp.float32))
    assert out_f32.shape == (B, r_dim)
    assert jnp.allclose(out_f32, ref, atol=1e-5, rtol=1e-5), "f32 mismatch vs ref"

    # Fast path (bf16 MXU operands, f32 accumulate) — default for v6e / v7x.
    out_bf16 = jax.block_until_ready(np_encoder_forward(x, y_onehot, params))
    assert out_bf16.shape == (B, r_dim)
    assert jnp.allclose(out_bf16, ref, atol=5e-2, rtol=5e-2), "bf16 mismatch vs ref"

    print("KERNEL_OK")
</pallas_src>

<mosaic_0001>
module attributes {stable_mosaic.version = 11 : i64} {
  func.func @np_encoder_kernel(%arg0: i32, %arg1: memref<128x16xf32, #tpu.memory_space<vmem>>, %arg2: memref<128x10xf32, #tpu.memory_space<vmem>>, %arg3: memref<16x128xf32, #tpu.memory_space<vmem>>, %arg4: memref<10x128xf32, #tpu.memory_space<vmem>>, %arg5: memref<1x128xf32, #tpu.memory_space<vmem>>, %arg6: memref<128x128xf32, #tpu.memory_space<vmem>>, %arg7: memref<1x128xf32, #tpu.memory_space<vmem>>, %arg8: memref<128x128xf32, #tpu.memory_space<vmem>>, %arg9: memref<1x128xf32, #tpu.memory_space<vmem>>, %arg10: memref<128x128xf32, #tpu.memory_space<vmem>>) attributes {dimension_semantics = [#tpu.dimension_semantics<parallel>], iteration_bounds = array<i64: 2>, scalar_prefetch = 0 : i64, scratch_operands = 0 : i64, tpu.core_type = #tpu.core_type<tc>, window_params = [{transform_indices = @transform_0, window_bounds = array<i64: 128, 16>}, {transform_indices = @transform_1, window_bounds = array<i64: 128, 10>}, {pipeline_mode = #tpu.pipeline_mode<synchronous>, transform_indices = @transform_2, window_bounds = array<i64: 16, 128>}, {pipeline_mode = #tpu.pipeline_mode<synchronous>, transform_indices = @transform_3, window_bounds = array<i64: 10, 128>}, {pipeline_mode = #tpu.pipeline_mode<synchronous>, transform_indices = @transform_4, window_bounds = array<i64: 1, 128>}, {pipeline_mode = #tpu.pipeline_mode<synchronous>, transform_indices = @transform_5, window_bounds = array<i64: 128, 128>}, {pipeline_mode = #tpu.pipeline_mode<synchronous>, transform_indices = @transform_6, window_bounds = array<i64: 1, 128>}, {pipeline_mode = #tpu.pipeline_mode<synchronous>, transform_indices = @transform_7, window_bounds = array<i64: 128, 128>}, {pipeline_mode = #tpu.pipeline_mode<synchronous>, transform_indices = @transform_8, window_bounds = array<i64: 1, 128>}, {transform_indices = @transform_9, window_bounds = array<i64: 128, 128>}]} {
    %c0 = arith.constant 0 : index
    %c0_0 = arith.constant 0 : index
    %0 = vector.load %arg1[%c0, %c0_0] : memref<128x16xf32, #tpu.memory_space<vmem>>, vector<128x16xf32>
    %c0_1 = arith.constant 0 : index
    %c0_2 = arith.constant 0 : index
    %1 = vector.load %arg2[%c0_1, %c0_2] : memref<128x10xf32, #tpu.memory_space<vmem>>, vector<128x10xf32>
    %c0_3 = arith.constant 0 : index
    %c0_4 = arith.constant 0 : index
    %2 = vector.load %arg3[%c0_3, %c0_4] : memref<16x128xf32, #tpu.memory_space<vmem>>, vector<16x128xf32>
    %cst = arith.constant dense<0.000000e+00> : vector<128x128xf32>
    %3 = tpu.matmul %0, %2, %cst {dimension_numbers = #tpu.dot_dimension_numbers<[1], [0], [0], [1], [0, 0, 1, 1], [], []>} : vector<128x16xf32>, vector<16x128xf32>, vector<128x128xf32> -> vector<128x128xf32>
    %c0_5 = arith.constant 0 : index
    %c0_6 = arith.constant 0 : index
    %4 = vector.load %arg4[%c0_5, %c0_6] : memref<10x128xf32, #tpu.memory_space<vmem>>, vector<10x128xf32>
    %cst_7 = arith.constant dense<0.000000e+00> : vector<128x128xf32>
    %5 = tpu.matmul %1, %4, %cst_7 {dimension_numbers = #tpu.dot_dimension_numbers<[1], [0], [0], [1], [0, 0, 1, 1], [], []>} : vector<128x10xf32>, vector<10x128xf32>, vector<128x128xf32> -> vector<128x128xf32>
    %6 = arith.addf %3, %5 : vector<128x128xf32>
    %c0_8 = arith.constant 0 : index
    %c0_9 = arith.constant 0 : index
    %7 = vector.load %arg5[%c0_8, %c0_9] : memref<1x128xf32, #tpu.memory_space<vmem>>, vector<1x128xf32>
    %8 = vector.broadcast %7 : vector<1x128xf32> to vector<128x128xf32>
    %9 = arith.addf %6, %8 : vector<128x128xf32>
    %cst_10 = arith.constant 0.000000e+00 : f32
    %10 = vector.broadcast %cst_10 : f32 to vector<128x128xf32>
    %11 = arith.maximumf %9, %10 : vector<128x128xf32>
    %c0_11 = arith.constant 0 : index
    %c0_12 = arith.constant 0 : index
    %12 = vector.load %arg6[%c0_11, %c0_12] : memref<128x128xf32, #tpu.memory_space<vmem>>, vector<128x128xf32>
    %cst_13 = arith.constant dense<0.000000e+00> : vector<128x128xf32>
    %13 = tpu.matmul %11, %12, %cst_13 {dimension_numbers = #tpu.dot_dimension_numbers<[1], [0], [0], [1], [0, 0, 1, 1], [], []>} : vector<128x128xf32>, vector<128x128xf32>, vector<128x128xf32> -> vector<128x128xf32>
    %c0_14 = arith.constant 0 : index
    %c0_15 = arith.constant 0 : index
    %14 = vector.load %arg7[%c0_14, %c0_15] : memref<1x128xf32, #tpu.memory_space<vmem>>, vector<1x128xf32>
    %15 = vector.broadcast %14 : vector<1x128xf32> to vector<128x128xf32>
    %16 = arith.addf %13, %15 : vector<128x128xf32>
    %cst_16 = arith.constant 0.000000e+00 : f32
    %17 = vector.broadcast %cst_16 : f32 to vector<128x128xf32>
    %18 = arith.maximumf %16, %17 : vector<128x128xf32>
    %c0_17 = arith.constant 0 : index
    %c0_18 = arith.constant 0 : index
    %19 = vector.load %arg8[%c0_17, %c0_18] : memref<128x128xf32, #tpu.memory_space<vmem>>, vector<128x128xf32>
    %cst_19 = arith.constant dense<0.000000e+00> : vector<128x128xf32>
    %20 = tpu.matmul %18, %19, %cst_19 {dimension_numbers = #tpu.dot_dimension_numbers<[1], [0], [0], [1], [0, 0, 1, 1], [], []>} : vector<128x128xf32>, vector<128x128xf32>, vector<128x128xf32> -> vector<128x128xf32>
    %c0_20 = arith.constant 0 : index
    %c0_21 = arith.constant 0 : index
    %21 = vector.load %arg9[%c0_20, %c0_21] : memref<1x128xf32, #tpu.memory_space<vmem>>, vector<1x128xf32>
    %22 = vector.broadcast %21 : vector<1x128xf32> to vector<128x128xf32>
    %23 = arith.addf %20, %22 : vector<128x128xf32>
    %c0_22 = arith.constant 0 : index
    %c0_23 = arith.constant 0 : index
    %24 = vector.load %arg10[%c0_22, %c0_23] : memref<128x128xf32, #tpu.memory_space<vmem>>, vector<128x128xf32>
    tpu.vector_store %arg10[%c0_22, %c0_23], %23 {strides = array<i32>} : memref<128x128xf32, #tpu.memory_space<vmem>>, vector<128x128xf32>,
    return
  }
  func.func @transform_0(%arg0: i32) -> (i32, i32) {
    %c0_i32 = arith.constant 0 : i32
    %c0_i32_0 = arith.constant 0 : i32
    return %arg0, %c0_i32 : i32, i32
  }
  func.func @transform_1(%arg0: i32) -> (i32, i32) {
    %c0_i32 = arith.constant 0 : i32
    %c0_i32_0 = arith.constant 0 : i32
    return %arg0, %c0_i32 : i32, i32
  }
  func.func @transform_2(%arg0: i32) -> (i32, i32) {
    %c0_i32 = arith.constant 0 : i32
    %c0_i32_0 = arith.constant 0 : i32
    %c0_i32_1 = arith.constant 0 : i32
    return %c0_i32, %c0_i32_0 : i32, i32
  }
  func.func @transform_3(%arg0: i32) -> (i32, i32) {
    %c0_i32 = arith.constant 0 : i32
    %c0_i32_0 = arith.constant 0 : i32
    %c0_i32_1 = arith.constant 0 : i32
    return %c0_i32, %c0_i32_0 : i32, i32
  }
  func.func @transform_4(%arg0: i32) -> (i32, i32) {
    %c0_i32 = arith.constant 0 : i32
    %c0_i32_0 = arith.constant 0 : i32
    %c0_i32_1 = arith.constant 0 : i32
    return %c0_i32, %c0_i32_0 : i32, i32
  }
  func.func @transform_5(%arg0: i32) -> (i32, i32) {
    %c0_i32 = arith.constant 0 : i32
    %c0_i32_0 = arith.constant 0 : i32
    %c0_i32_1 = arith.constant 0 : i32
    return %c0_i32, %c0_i32_0 : i32, i32
  }
  func.func @transform_6(%arg0: i32) -> (i32, i32) {
    %c0_i32 = arith.constant 0 : i32
    %c0_i32_0 = arith.constant 0 : i32
    %c0_i32_1 = arith.constant 0 : i32
    return %c0_i32, %c0_i32_0 : i32, i32
  }
  func.func @transform_7(%arg0: i32) -> (i32, i32) {
    %c0_i32 = arith.constant 0 : i32
    %c0_i32_0 = arith.constant 0 : i32
    %c0_i32_1 = arith.constant 0 : i32
    return %c0_i32, %c0_i32_0 : i32, i32
  }
  func.func @transform_8(%arg0: i32) -> (i32, i32) {
    %c0_i32 = arith.constant 0 : i32
    %c0_i32_0 = arith.constant 0 : i32
    %c0_i32_1 = arith.constant 0 : i32
    return %c0_i32, %c0_i32_0 : i32, i32
  }
  func.func @transform_9(%arg0: i32) -> (i32, i32) {
    %c0_i32 = arith.constant 0 : i32
    %c0_i32_0 = arith.constant 0 : i32
    return %arg0, %c0_i32 : i32, i32
  }
}

</mosaic_0001>

<llo_original>
// kernel: tpu_custom_call.1
$region0: #{tpu_custom_call.1}
  #allocation0 [shape = 'u32[]', space=smem, size = 0x4, offset = 0x4, fixed_abs, tag = 'smem constant byte address 0x4 - core index']
  #allocation1 [shape = 'u32[144,128]{1,0:T(1,128)}', space=vmem, size = 0x12000, scoped, tag = 'internal scratch']
  %s0 = inlined_call_operand.vmem [shape: f32[256,16], index: 0, kind: input, shape index: {}]
  %s1 = inlined_call_operand.vmem [shape: f32[256,10], index: 1, kind: input, shape index: {}]
  %s2 = inlined_call_operand.vmem [shape: f32[16,128], index: 2, kind: input, shape index: {}]
  %s3 = inlined_call_operand.vmem [shape: f32[10,128], index: 3, kind: input, shape index: {}]
  %s4 = inlined_call_operand.vmem [shape: f32[1,128], index: 4, kind: input, shape index: {}]
  %s5 = inlined_call_operand.vmem [shape: f32[128,128], index: 5, kind: input, shape index: {}]
  %s6 = inlined_call_operand.vmem [shape: f32[1,128], index: 6, kind: input, shape index: {}]
  %s7 = inlined_call_operand.vmem [shape: f32[128,128], index: 7, kind: input, shape index: {}]
  %s8 = inlined_call_operand.vmem [shape: f32[1,128], index: 8, kind: input, shape index: {}]
  %s9 = inlined_call_operand.hbm [shape: f32[256,128], index: 9, kind: output, shape index: {}]
  %s10 = sld [smem:[#allocation0]]
  $region69: #{tpu_custom_call.1} parent=0
    _
  %s12 = ssub.s32 1, %s10
  %s13 = scalar_select 0, %s12, %s10
  $region1: #{tpu_custom_call.1} parent=0
    #allocation2 [shape = 'u8[131072]{0}', space=vmem, size = 0x20000, scoped, tag = 'output window, operand 0']
    #allocation3 [shape = 's32[2]{0}', space=sflag, size = 0x8, scoped, tag = 'scoped memory for tpu_custom_call.1']
    %14 = vsyncpa [#allocation3], 0
    %s15 = scalar_lea.sflag [#allocation3], 1
    %16 = vsyncpa %s15, 0
    loop: start=0, step=1, limit=4
    $region2: #{tpu_custom_call.1} parent=1 // loop_pre_header
      _
    $region3: #{tpu_custom_call.1} parent=1 // loop_header
      %s18 = sphi 0, %s22
      %p19 = scmp.ge.s32.totalorder %s18, 4
      %s28 = sphi 0, %s30
      %s31 = sphi 0, %s28
      %s32 = sphi 0, %s31
      %s48 = sphi 0, %s32
      %s54 = sphi 0, %s56
      %s57 = sphi 0, %s54
      %s58 = sphi 0, %s57
      %s74 = sphi 0, %s58
      %s78 = sphi 0, %s78
      %s80 = sphi 0, %s78
      %s81 = sphi 0, %s80
      %s95 = sphi 0, %s81
      %s99 = sphi 0, %s99
      %s101 = sphi 0, %s99
      %s102 = sphi 0, %s101
      %s116 = sphi 0, %s102
      %s120 = sphi 0, %s120
      %s122 = sphi 0, %s120
      %s123 = sphi 0, %s122
      %s137 = sphi 0, %s123
      %s141 = sphi 0, %s141
      %s143 = sphi 0, %s141
      %s144 = sphi 0, %s143
      %s158 = sphi 0, %s144
      %s162 = sphi 0, %s162
      %s164 = sphi 0, %s162
      %s165 = sphi 0, %s164
      %s179 = sphi 0, %s165
      %s183 = sphi 0, %s183
      %s185 = sphi 0, %s183
      %s186 = sphi 0, %s185
      %s200 = sphi 0, %s186
      %s204 = sphi 0, %s204
      %s206 = sphi 0, %s204
      %s207 = sphi 0, %s206
      %s221 = sphi 0, %s207
      %s227 = sphi 0, %s229
      %s230 = sphi 0, %s227
      %s231 = sphi 0, %s230
      %s247 = sphi 0, %s231
    $region4: #{tpu_custom_call.1} parent=1 // loop_header_branch
      %21 = sbr.rel (%p19) target = $region8
    $region5: #{tpu_custom_call.1} parent=1 // loop_body
      %s23 = ssub.s32 %s18, 1
      %s24 = ssub.s32 %s18, 2
      %s25 = sadd.s32 %s18, 1
      %s26 = ssub.s32 %s18, %s25
      %p27 = scmp.eq.s32.totalorder %s26, 0
      %s29 = sadd.s32 %s28, 1
      %s30 = scalar_select %p27, %s28, %s29
      %p33 = pneg %p27
      %p34 = scmp.eq.s32.totalorder %s18, 1
      %p35 = por %p33, %p34
      %p36 = scmp.ne.s32.totalorder %s28, %s31
      %p37 = scmp.eq.s32.totalorder %s18, 0
      %p38 = por %p36, %p37
      %p39 = scmp.ne.s32.totalorder %s28, %s31
      %p40 = scmp.eq.s32.totalorder %s23, 1
      %p41 = por %p39, %p40
      %p42 = scmp.ne.s32.totalorder %s31, %s32
      %p43 = scmp.eq.s32.totalorder %s23, 0
      %p44 = por %p42, %p43
      %p45 = scmp.ne.s32.totalorder %s31, %s32
      %p46 = scmp.eq.s32.totalorder %s24, 1
      %p47 = por %p45, %p46
      %p49 = scmp.ne.s32.totalorder %s32, %s48
      %p50 = scmp.eq.s32.totalorder %s24, 0
      %p51 = por %p49, %p50
      %s52 = ssub.s32 %s18, %s25
      %p53 = scmp.eq.s32.totalorder %s52, 0
      %s55 = sadd.s32 %s54, 1
      %s56 = scalar_select %p53, %s54, %s55
      %p59 = pneg %p53
      %p60 = scmp.eq.s32.totalorder %s18, 1
      %p61 = por %p59, %p60
      %p62 = scmp.ne.s32.totalorder %s54, %s57
      %p63 = scmp.eq.s32.totalorder %s18, 0
      %p64 = por %p62, %p63
      %p65 = scmp.ne.s32.totalorder %s54, %s57
      %p66 = scmp.eq.s32.totalorder %s23, 1
      %p67 = por %p65, %p66
      %p68 = scmp.ne.s32.totalorder %s57, %s58
      %p69 = scmp.eq.s32.totalorder %s23, 0
      %p70 = por %p68, %p69
      %p71 = scmp.ne.s32.totalorder %s57, %s58
      %p72 = scmp.eq.s32.totalorder %s24, 1
      %p73 = por %p71, %p72
      %p75 = scmp.ne.s32.totalorder %s58, %s74
      %p76 = scmp.eq.s32.totalorder %s24, 0
      %p77 = por %p75, %p76
      %s79 = sadd.s32 %s78, 1
      %p82 = scmp.eq.s32.totalorder %s18, 1
      %p83 = scmp.ne.s32.totalorder %s78, %s80
      %p84 = scmp.eq.s32.totalorder %s18, 0
      %p85 = por %p83, %p84
      %p86 = scmp.ne.s32.totalorder %s78, %s80
      %p87 = scmp.eq.s32.totalorder %s23, 1
      %p88 = por %p86, %p87
      %p89 = scmp.ne.s32.totalorder %s80, %s81
      %p90 = scmp.eq.s32.totalorder %s23, 0
      %p91 = por %p89, %p90
      %p92 = scmp.ne.s32.totalorder %s80, %s81
      %p93 = scmp.eq.s32.totalorder %s24, 1
      %p94 = por %p92, %p93
      %p96 = scmp.ne.s32.totalorder %s81, %s95
      %p97 = scmp.eq.s32.totalorder %s24, 0
      %p98 = por %p96, %p97
      %s100 = sadd.s32 %s99, 1
      %p103 = scmp.eq.s32.totalorder %s18, 1
      %p104 = scmp.ne.s32.totalorder %s99, %s101
      %p105 = scmp.eq.s32.totalorder %s18, 0
      %p106 = por %p104, %p105
      %p107 = scmp.ne.s32.totalorder %s99, %s101
      %p108 = scmp.eq.s32.totalorder %s23, 1
      %p109 = por %p107, %p108
      %p110 = scmp.ne.s32.totalorder %s101, %s102
      %p111 = scmp.eq.s32.totalorder %s23, 0
      %p112 = por %p110, %p111
      %p113 = scmp.ne.s32.totalorder %s101, %s102
      %p114 = scmp.eq.s32.totalorder %s24, 1
      %p115 = por %p113, %p114
      %p117 = scmp.ne.s32.totalorder %s102, %s116
      %p118 = scmp.eq.s32.totalorder %s24, 0
      %p119 = por %p117, %p118
      %s121 = sadd.s32 %s120, 1
      %p124 = scmp.eq.s32.totalorder %s18, 1
      %p125 = scmp.ne.s32.totalorder %s120, %s122
      %p126 = scmp.eq.s32.totalorder %s18, 0
      %p127 = por %p125, %p126
      %p128 = scmp.ne.s32.totalorder %s120, %s122
      %p129 = scmp.eq.s32.totalorder %s23, 1
      %p130 = por %p128, %p129
      %p131 = scmp.ne.s32.totalorder %s122, %s123
      %p132 = scmp.eq.s32.totalorder %s23, 0
      %p133 = por %p131, %p132
      %p134 = scmp.ne.s32.totalorder %s122, %s123
      %p135 = scmp.eq.s32.totalorder %s24, 1
      %p136 = por %p134, %p135
      %p138 = scmp.ne.s32.totalorder %s123, %s137
      %p139 = scmp.eq.s32.totalorder %s24, 0
      %p140 = por %p138, %p139
      %s142 = sadd.s32 %s141, 1
      %p145 = scmp.eq.s32.totalorder %s18, 1
      %p146 = scmp.ne.s32.totalorder %s141, %s143
      %p147 = scmp.eq.s32.totalorder %s18, 0
      %p148 = por %p146, %p147
      %p149 = scmp.ne.s32.totalorder %s141, %s143
      %p150 = scmp.eq.s32.totalorder %s23, 1
      %p151 = por %p149, %p150
      %p152 = scmp.ne.s32.totalorder %s143, %s144
      %p153 = scmp.eq.s32.totalorder %s23, 0
      %p154 = por %p152, %p153
      %p155 = scmp.ne.s32.totalorder %s143, %s144
      %p156 = scmp.eq.s32.totalorder %s24, 1
      %p157 = por %p155, %p156
      %p159 = scmp.ne.s32.totalorder %s144, %s158
      %p160 = scmp.eq.s32.totalorder %s24, 0
      %p161 = por %p159, %p160
      %s163 = sadd.s32 %s162, 1
      %p166 = scmp.eq.s32.totalorder %s18, 1
      %p167 = scmp.ne.s32.totalorder %s162, %s164
      %p168 = scmp.eq.s32.totalorder %s18, 0
      %p169 = por %p167, %p168
      %p170 = scmp.ne.s32.totalorder %s162, %s164
      %p171 = scmp.eq.s32.totalorder %s23, 1
      %p172 = por %p170, %p171
      %p173 = scmp.ne.s32.totalorder %s164, %s165
      %p174 = scmp.eq.s32.totalorder %s23, 0
      %p175 = por %p173, %p174
      %p176 = scmp.ne.s32.totalorder %s164, %s165
      %p177 = scmp.eq.s32.totalorder %s24, 1
      %p178 = por %p176, %p177
      %p180 = scmp.ne.s32.totalorder %s165, %s179
      %p181 = scmp.eq.s32.totalorder %s24, 0
      %p182 = por %p180, %p181
      %s184 = sadd.s32 %s183, 1
      %p187 = scmp.eq.s32.totalorder %s18, 1
      %p188 = scmp.ne.s32.totalorder %s183, %s185
      %p189 = scmp.eq.s32.totalorder %s18, 0
      %p190 = por %p188, %p189
      %p191 = scmp.ne.s32.totalorder %s183, %s185
      %p192 = scmp.eq.s32.totalorder %s23, 1
      %p193 = por %p191, %p192
      %p194 = scmp.ne.s32.totalorder %s185, %s186
      %p195 = scmp.eq.s32.totalorder %s23, 0
      %p196 = por %p194, %p195
      %p197 = scmp.ne.s32.totalorder %s185, %s186
      %p198 = scmp.eq.s32.totalorder %s24, 1
      %p199 = por %p197, %p198
      %p201 = scmp.ne.s32.totalorder %s186, %s200
      %p202 = scmp.eq.s32.totalorder %s24, 0
      %p203 = por %p201, %p202
      %s205 = sadd.s32 %s204, 1
      %p208 = scmp.eq.s32.totalorder %s18, 1
      %p209 = scmp.ne.s32.totalorder %s204, %s206
      %p210 = scmp.eq.s32.totalorder %s18, 0
      %p211 = por %p209, %p210
      %p212 = scmp.ne.s32.totalorder %s204, %s206
      %p213 = scmp.eq.s32.totalorder %s23, 1
      %p214 = por %p212, %p213
      %p215 = scmp.ne.s32.totalorder %s206, %s207
      %p216 = scmp.eq.s32.totalorder %s23, 0
      %p217 = por %p215, %p216
      %p218 = scmp.ne.s32.totalorder %s206, %s207
      %p219 = scmp.eq.s32.totalorder %s24, 1
      %p220 = por %p218, %p219
      %p222 = scmp.ne.s32.totalorder %s207, %s221
      %p223 = scmp.eq.s32.totalorder %s24, 0
      %p224 = por %p222, %p223
      %s225 = ssub.s32 %s18, %s25
      %p226 = scmp.eq.s32.totalorder %s225, 0
      %s228 = sadd.s32 %s227, 1
      %s229 = scalar_select %p226, %s227, %s228
      %p232 = pneg %p226
      %p233 = scmp.eq.s32.totalorder %s18, 1
      %p234 = por %p232, %p233
      %p235 = scmp.ne.s32.totalorder %s227, %s230
      %p236 = scmp.eq.s32.totalorder %s18, 0
      %p237 = por %p235, %p236
      %p238 = scmp.ne.s32.totalorder %s227, %s230
      %p239 = scmp.eq.s32.totalorder %s23, 1
      %p240 = por %p238, %p239
      %p241 = scmp.ne.s32.totalorder %s230, %s231
      %p242 = scmp.eq.s32.totalorder %s23, 0
      %p243 = por %p241, %p242
      %p244 = scmp.ne.s32.totalorder %s230, %s231
      %p245 = scmp.eq.s32.totalorder %s24, 1
      %p246 = por %p244, %p245
      %p248 = scmp.ne.s32.totalorder %s231, %s247
      %p249 = scmp.eq.s32.totalorder %s24, 0
      %p250 = por %p248, %p249
      %p251 = scmp.le.s32.totalorder 1, %s18
      %p252 = scmp.lt.s32.totalorder %s18, 3
      %p253 = pnand %p251, %p252
      %p254 = pneg %p253
      // Predicated region
      $region9: #{tpu_custom_call.1} parent=5 // pred_check
        _
      $region10: #{tpu_custom_call.1} parent=5 // pred_check_branch
        %256 = sbr.rel (%p253) target = $region12
      $region11: #{tpu_custom_call.1} parent=5 // pred_region
        %s257 = ssub.s32 %s18, 1
        // Predicated region
        $region13: #{tpu_custom_call.1} parent=11 // pred_check
          %p258 = pneg %p91
        $region14: #{tpu_custom_call.1} parent=11 // pred_check_branch
          %260 = sbr.rel (%p258) target = $region16
        $region15: #{tpu_custom_call.1} parent=11 // pred_region
          _
        $region16: #{tpu_custom_call.1} parent=11 // pred_fallthru
          _
        // Predicated region
        $region17: #{tpu_custom_call.1} parent=11 // pred_check
          %p261 = pneg %p112
        $region18: #{tpu_custom_call.1} parent=11 // pred_check_branch
          %263 = sbr.rel (%p261) target = $region20
        $region19: #{tpu_custom_call.1} parent=11 // pred_region
          _
        $region20: #{tpu_custom_call.1} parent=11 // pred_fallthru
          _
        // Predicated region
        $region21: #{tpu_custom_call.1} parent=11 // pred_check
          %p264 = pneg %p133
        $region22: #{tpu_custom_call.1} parent=11 // pred_check_branch
          %266 = sbr.rel (%p264) target = $region24
        $region23: #{tpu_custom_call.1} parent=11 // pred_region
          _
        $region24: #{tpu_custom_call.1} parent=11 // pred_fallthru
          _
        // Predicated region
        $region25: #{tpu_custom_call.1} parent=11 // pred_check
          %p267 = pneg %p154
        $region26: #{tpu_custom_call.1} parent=11 // pred_check_branch
          %269 = sbr.rel (%p267) target = $region28
        $region27: #{tpu_custom_call.1} parent=11 // pred_region
          _
        $region28: #{tpu_custom_call.1} parent=11 // pred_fallthru
          _
        // Predicated region
        $region29: #{tpu_custom_call.1} parent=11 // pred_check
          %p270 = pneg %p175
        $region30: #{tpu_custom_call.1} parent=11 // pred_check_branch
          %272 = sbr.rel (%p270) target = $region32
        $region31: #{tpu_custom_call.1} parent=11 // pred_region
          _
        $region32: #{tpu_custom_call.1} parent=11 // pred_fallthru
          _
        // Predicated region
        $region33: #{tpu_custom_call.1} parent=11 // pred_check
          %p273 = pneg %p196
        $region34: #{tpu_custom_call.1} parent=11 // pred_check_branch
          %275 = sbr.rel (%p273) target = $region36
        $region35: #{tpu_custom_call.1} parent=11 // pred_region
          _
        $region36: #{tpu_custom_call.1} parent=11 // pred_fallthru
          _
        // Predicated region
        $region37: #{tpu_custom_call.1} parent=11 // pred_check
          %p276 = pneg %p217
        $region38: #{tpu_custom_call.1} parent=11 // pred_check_branch
          %278 = sbr.rel (%p276) target = $region40
        $region39: #{tpu_custom_call.1} parent=11 // pred_region
          _
        $region40: #{tpu_custom_call.1} parent=11 // pred_fallthru
          _
      $region12: #{tpu_custom_call.1} parent=5 // pred_fallthru
        _
      %p279 = scmp.lt.s32.totalorder %s18, 2
      // Predicated region
      $region41: #{tpu_custom_call.1} parent=5 // pred_check
        %p280 = pneg %p279
      $region42: #{tpu_custom_call.1} parent=5 // pred_check_branch
        %282 = sbr.rel (%p280) target = $region44
      $region43: #{tpu_custom_call.1} parent=5 // pred_region
        // Predicated region
        $region45: #{tpu_custom_call.1} parent=43 // pred_check
          %p283 = pneg %p38
        $region46: #{tpu_custom_call.1} parent=43 // pred_check_branch
          %285 = sbr.rel (%p283) target = $region48
        $region47: #{tpu_custom_call.1} parent=43 // pred_region
          %s286 = smul.u32 16, %s18
          %p287 = scmp.lt.s32.totalorder %s286, 31
          %s288 = scalar_select %p287, %s286, 31
          %s289 = smul.addr %s288, 8
          %s290 = scalar_lea.vmem %s0, %s289
          %s291 = smul.u32 16, %s18
        $region48: #{tpu_custom_call.1} parent=43 // pred_fallthru
          _
        // Predicated region
        $region49: #{tpu_custom_call.1} parent=43 // pred_check
          %p292 = pneg %p64
        $region50: #{tpu_custom_call.1} parent=43 // pred_check_branch
          %294 = sbr.rel (%p292) target = $region52
        $region51: #{tpu_custom_call.1} parent=43 // pred_region
          %s295 = smul.u32 16, %s18
          %p296 = scmp.lt.s32.totalorder %s295, 31
          %s297 = scalar_select %p296, %s295, 31
          %s298 = smul.addr %s297, 8
          %s299 = scalar_lea.vmem %s1, %s298
          %s300 = smul.u32 16, %s18
        $region52: #{tpu_custom_call.1} parent=43 // pred_fallthru
          _
      $region44: #{tpu_custom_call.1} parent=5 // pred_fallthru
        _
      %p301 = scmp.le.s32.totalorder 1, %s18
      %p302 = scmp.lt.s32.totalorder %s18, 3
      %p303 = pnand %p301, %p302
      %p304 = pneg %p303
      // Predicated region
      $region53: #{tpu_custom_call.1} parent=5 // pred_check
        _
      $region54: #{tpu_custom_call.1} parent=5 // pred_check_branch
        %306 = sbr.rel (%p303) target = $region56
      $region55: #{tpu_custom_call.1} parent=5 // pred_region
        %s307 = ssub.s32 %s18, 1
        %s308 = smul.u32 16, %s23
        %p309 = scmp.lt.s32.totalorder %s308, 31
        %s310 = scalar_select %p309, %s308, 31
        %s311 = smul.addr %s310, 8
        %s312 = scalar_lea.vmem %s0, %s311
        %p313 = pneg %p44
        %p314 = pneg %p41
        %s315 = smul.u32 16, %s23
        %p316 = scmp.lt.s32.totalorder %s315, 31
        %s317 = scalar_select %p316, %s315, 31
        %s318 = smul.addr %s317, 8
        %s319 = scalar_lea.vmem %s1, %s318
        %p320 = pneg %p70
        %p321 = pneg %p67
        %p322 = pneg %p91
        %p323 = pneg %p88
        %p324 = pneg %p112
        %p325 = pneg %p109
        %p326 = pneg %p133
        %p327 = pneg %p130
        %p328 = pneg %p154
        %p329 = pneg %p151
        %p330 = pneg %p175
        %p331 = pneg %p172
        %p332 = pneg %p196
        %p333 = pneg %p193
        %p334 = pneg %p217
        %p335 = pneg %p214
        %p336 = pneg %p243
        %p337 = pneg %p240
        %s338 = sand.u32 %s230, 1
        %s339 = scalar_lea.sflag [#allocation3], %s338
        %s340 = sand.u32 %s230, 1
        %s341 = smul.addr %s340, 128
        %s342 = scalar_lea.vmem [#allocation2], %s341
        %s343 = smul.u32 16, %s23
        %p344 = scmp.lt.s32.totalorder %s343, 31
        %s345 = scalar_select %p344, %s343, 31
        %s346 = smul.addr %s345, 8
        %s347 = scalar_lea.vmem %s0, %s346
        %s348 = smul.u32 16, %s23
        %s349 = smul.u32 16, %s23
        %p350 = scmp.lt.s32.totalorder %s349, 31
        %s351 = scalar_select %p350, %s349, 31
        %s352 = smul.addr %s351, 8
        %s353 = scalar_lea.vmem %s1, %s352
        %s354 = smul.u32 16, %s23
        %s355 = smul.u32 16, %s23
        %v356 = vld [vmem:[%s347] sm:$0xff]
        %v357 = vld [vmem:[%s347 + $0x8] sm:$0xff]
        %v358 = vld [vmem:[%s347 + $0x10] sm:$0xff]
        %v359 = vld [vmem:[%s347 + $0x18] sm:$0xff]
        %v360 = vld [vmem:[%s347 + $0x20] sm:$0xff]
        %v361 = vld [vmem:[%s347 + $0x28] sm:$0xff]
        %v362 = vld [vmem:[%s347 + $0x30] sm:$0xff]
        %v363 = vld [vmem:[%s347 + $0x38] sm:$0xff]
        %v364 = vld [vmem:[%s347 + $0x40] sm:$0xff]
        %v365 = vld [vmem:[%s347 + $0x48] sm:$0xff]
        %v366 = vld [vmem:[%s347 + $0x50] sm:$0xff]
        %v367 = vld [vmem:[%s347 + $0x58] sm:$0xff]
        %v368 = vld [vmem:[%s347 + $0x60] sm:$0xff]
        %v369 = vld [vmem:[%s347 + $0x68] sm:$0xff]
        %v370 = vld [vmem:[%s347 + $0x70] sm:$0xff]
        %v371 = vld [vmem:[%s347 + $0x78] sm:$0xff]
        %v372 = vld [vmem:[%s353] sm:$0xff]
        %v373 = vld [vmem:[%s353 + $0x8] sm:$0xff]
        %v374 = vld [vmem:[%s353 + $0x10] sm:$0xff]
        %v375 = vld [vmem:[%s353 + $0x18] sm:$0xff]
        %v376 = vld [vmem:[%s353 + $0x20] sm:$0xff]
        %v377 = vld [vmem:[%s353 + $0x28] sm:$0xff]
        %v378 = vld [vmem:[%s353 + $0x30] sm:$0xff]
        %v379 = vld [vmem:[%s353 + $0x38] sm:$0xff]
        %v380 = vld [vmem:[%s353 + $0x40] sm:$0xff]
        %v381 = vld [vmem:[%s353 + $0x48] sm:$0xff]
        %v382 = vld [vmem:[%s353 + $0x50] sm:$0xff]
        %v383 = vld [vmem:[%s353 + $0x58] sm:$0xff]
        %v384 = vld [vmem:[%s353 + $0x60] sm:$0xff]
        %v385 = vld [vmem:[%s353 + $0x68] sm:$0xff]
        %v386 = vld [vmem:[%s353 + $0x70] sm:$0xff]
        %v387 = vld [vmem:[%s353 + $0x78] sm:$0xff]
        %v388 = vld [vmem:[%s2] sm:$0xff]
        %v389 = vld [vmem:[%s2 + $0x8] sm:$0xff]
        %v390 = vld [vmem:[%s3] sm:$0xff]
        %v391 = vld [vmem:[%s3 + $0x8] sm:$0x3]
        %vm392 = vcmask 80896
        %v394 = vsel %vm392, %v372, 0
        %v397 = vsel %vm392, %v373, 0
        %v400 = vsel %vm392, %v374, 0
        %v403 = vsel %vm392, %v375, 0
        %v406 = vsel %vm392, %v376, 0
        %v409 = vsel %vm392, %v377, 0
        %v412 = vsel %vm392, %v378, 0
        %v415 = vsel %vm392, %v379, 0
        %v418 = vsel %vm392, %v380, 0
        %v421 = vsel %vm392, %v381, 0
        %v424 = vsel %vm392, %v382, 0
        %v427 = vsel %vm392, %v383, 0
        %v430 = vsel %vm392, %v384, 0
        %v433 = vsel %vm392, %v385, 0
        %v436 = vsel %vm392, %v386, 0
        %v439 = vsel %vm392, %v387, 0
        %vm441 = vcmask 1041408
        %v443 = vsel %vm441, %v391, 0
        %445 = vmatprep.subr.mxu0 0.0
        %446 = vmatpush1.msra.mxu0 0.0
        %447 = vmatprep.subr.mxu0 0.0
        %448 = vmatpush1.msra.mxu0 0.0
        %449 = vmatprep.subr.mxu0 0.0
        %450 = vmatpush1.msra.mxu0 0.0
        %451 = vmatprep.subr.mxu0 0.0
        %452 = vmatpush1.msra.mxu0 0.0
        %453 = vmatprep.subr.mxu0 0.0
        %454 = vmatpush1.msra.mxu0 0.0
        %455 = vmatprep.subr.mxu0 0.0
        %456 = vmatpush1.msra.mxu0 0.0
        %457 = vmatprep.subr.mxu0 0.0
        %458 = vmatpush1.msra.mxu0 0.0
        %459 = vmatprep.subr.mxu0 0.0
        %460 = vmatpush1.msra.mxu0 0.0
        %461 = vmatprep.subr.mxu0 0.0
        %462 = vmatpush1.msra.mxu0 0.0
        %463 = vmatprep.subr.mxu0 0.0
        %464 = vmatpush1.msra.mxu0 0.0
        %465 = vmatprep.subr.mxu0 0.0
        %466 = vmatpush1.msra.mxu0 0.0
        %467 = vmatprep.subr.mxu0 0.0
        %468 = vmatpush1.msra.mxu0 0.0
        %469 = vmatprep.subr.mxu0 0.0
        %470 = vmatpush1.msra.mxu0 0.0
        %471 = vmatprep.subr.mxu0 0.0
        %472 = vmatpush1.msra.mxu0 0.0
        %473 = vmatprep.subr.mxu0 0.0
        %474 = vmatpush1.msra.mxu0 %v443
        %475 = vmatprep.subr.mxu0 0.0
        %476 = vmatpush1.msra.mxu0 %v390
        %477 = vmatprep.subr.mxu0 0.0
        %478 = vmatpush2.msra.mxu0 0.0
        %479 = vmatprep.subr.mxu0 0.0
        %480 = vmatpush2.msra.mxu0 0.0
        %481 = vmatprep.subr.mxu0 0.0
        %482 = vmatpush2.msra.mxu0 0.0
        %483 = vmatprep.subr.mxu0 0.0
        %484 = vmatpush2.msra.mxu0 0.0
        %485 = vmatprep.subr.mxu0 0.0
        %486 = vmatpush2.msra.mxu0 0.0
        %487 = vmatprep.subr.mxu0 0.0
        %488 = vmatpush2.msra.mxu0 0.0
        %489 = vmatprep.subr.mxu0 0.0
        %490 = vmatpush2.msra.mxu0 0.0
        %491 = vmatprep.subr.mxu0 0.0
        %492 = vmatpush2.msra.mxu0 0.0
        %493 = vmatprep.subr.mxu0 0.0
        %494 = vmatpush2.msra.mxu0 0.0
        %495 = vmatprep.subr.mxu0 0.0
        %496 = vmatpush2.msra.mxu0 0.0
        %497 = vmatprep.subr.mxu0 0.0
        %498 = vmatpush2.msra.mxu0 0.0
        %499 = vmatprep.subr.mxu0 0.0
        %500 = vmatpush2.msra.mxu0 0.0
        %501 = vmatprep.subr.mxu0 0.0
        %502 = vmatpush2.msra.mxu0 0.0
        %503 = vmatprep.subr.mxu0 0.0
        %504 = vmatpush2.msra.mxu0 0.0
        %505 = vmatprep.subr.mxu0 0.0
        %506 = vmatpush2.msra.mxu0 0.0
        %507 = vmatprep.subr.mxu0 0.0
        %508 = vmatpush2.msra.mxu0 0.0
        %509 = vmatprep.mubr.f32.mxu0 0.0
        %510 = vmatmul.mubr.f32.gmra.mxu0 %v394
        %v511 = vpop.f32.mrf.mxu0
        %v512 = vadd.f32 0.0, %v511
        %v513 = vpop.f32.mrf.mxu0
        %514 = vmatprep.mubr.f32.mxu0 0.0
        %515 = vmatmul.mubr.f32.gmra.mxu0 %v397
        %v516 = vpop.f32.mrf.mxu0
        %v517 = vadd.f32 0.0, %v516
        %v518 = vpop.f32.mrf.mxu0
        %519 = vmatprep.mubr.f32.mxu0 0.0
        %520 = vmatmul.mubr.f32.gmra.mxu0 %v400
        %v521 = vpop.f32.mrf.mxu0
        %v522 = vadd.f32 0.0, %v521
        %v523 = vpop.f32.mrf.mxu0
        %524 = vmatprep.mubr.f32.mxu0 0.0
        %525 = vmatmul.mubr.f32.gmra.mxu0 %v403
        %v526 = vpop.f32.mrf.mxu0
        %v527 = vadd.f32 0.0, %v526
        %v528 = vpop.f32.mrf.mxu0
        %529 = vmatprep.mubr.f32.mxu0 0.0
        %530 = vmatmul.mubr.f32.gmra.mxu0 %v406
        %v531 = vpop.f32.mrf.mxu0
        %v532 = vadd.f32 0.0, %v531
        %v533 = vpop.f32.mrf.mxu0
        %534 = vmatprep.mubr.f32.mxu0 0.0
        %535 = vmatmul.mubr.f32.gmra.mxu0 %v409
        %v536 = vpop.f32.mrf.mxu0
        %v537 = vadd.f32 0.0, %v536
        %v538 = vpop.f32.mrf.mxu0
        %539 = vmatprep.mubr.f32.mxu0 0.0
        %540 = vmatmul.mubr.f32.gmra.mxu0 %v412
        %v541 = vpop.f32.mrf.mxu0
        %v542 = vadd.f32 0.0, %v541
        %v543 = vpop.f32.mrf.mxu0
        %544 = vmatprep.mubr.f32.mxu0 0.0
        %545 = vmatmul.mubr.f32.gmra.mxu0 %v415
        %v546 = vpop.f32.mrf.mxu0
        %v547 = vadd.f32 0.0, %v546
        %v548 = vpop.f32.mrf.mxu0
        %549 = vmatprep.mubr.f32.mxu0 0.0
        %550 = vmatmul.mubr.f32.gmra.mxu0 %v418
        %v551 = vpop.f32.mrf.mxu0
        %v552 = vadd.f32 0.0, %v551
        %v553 = vpop.f32.mrf.mxu0
        %554 = vmatprep.mubr.f32.mxu0 0.0
        %555 = vmatmul.mubr.f32.gmra.mxu0 %v421
        %v556 = vpop.f32.mrf.mxu0
        %v557 = vadd.f32 0.0, %v556
        %v558 = vpop.f32.mrf.mxu0
        %559 = vmatprep.mubr.f32.mxu0 0.0
        %560 = vmatmul.mubr.f32.gmra.mxu0 %v424
        %v561 = vpop.f32.mrf.mxu0
        %v562 = vadd.f32 0.0, %v561
        %v563 = vpop.f32.mrf.mxu0
        %564 = vmatprep.mubr.f32.mxu0 0.0
        %565 = vmatmul.mubr.f32.gmra.mxu0 %v427
        %v566 = vpop.f32.mrf.mxu0
        %v567 = vadd.f32 0.0, %v566
        %v568 = vpop.f32.mrf.mxu0
        %569 = vmatprep.mubr.f32.mxu0 0.0
        %570 = vmatmul.mubr.f32.gmra.mxu0 %v430
        %v571 = vpop.f32.mrf.mxu0
        %v572 = vadd.f32 0.0, %v571
        %v573 = vpop.f32.mrf.mxu0
        %574 = vmatprep.mubr.f32.mxu0 0.0
        %575 = vmatmul.mubr.f32.gmra.mxu0 %v433
        %v576 = vpop.f32.mrf.mxu0
        %v577 = vadd.f32 0.0, %v576
        %v578 = vpop.f32.mrf.mxu0
        %579 = vmatprep.mubr.f32.mxu0 0.0
        %580 = vmatmul.mubr.f32.gmra.mxu0 %v436
        %v581 = vpop.f32.mrf.mxu0
        %v582 = vadd.f32 0.0, %v581
        %v583 = vpop.f32.mrf.mxu0
        %584 = vmatprep.mubr.f32.mxu0 0.0
        %585 = vmatmul.mubr.f32.gmra.mxu0 %v439
        %v586 = vpop.f32.mrf.mxu0
        %v587 = vadd.f32 0.0, %v586
        %v588 = vpop.f32.mrf.mxu0
        %589 = vdwg.mxu0
        %vm590 = vcmask 130048
        %v592 = vsel %vm590, %v356, 0
        %v595 = vsel %vm590, %v357, 0
        %v598 = vsel %vm590, %v358, 0
        %v601 = vsel %vm590, %v359, 0
        %v604 = vsel %vm590, %v360, 0
        %v607 = vsel %vm590, %v361, 0
        %v610 = vsel %vm590, %v362, 0
        %v613 = vsel %vm590, %v363, 0
        %v616 = vsel %vm590, %v364, 0
        %v619 = vsel %vm590, %v365, 0
        %v622 = vsel %vm590, %v366, 0
        %v625 = vsel %vm590, %v367, 0
        %v628 = vsel %vm590, %v368, 0
        %v631 = vsel %vm590, %v369, 0
        %v634 = vsel %vm590, %v370, 0
        %v637 = vsel %vm590, %v371, 0
        %639 = vmatprep.subr.mxu0 0.0
        %640 = vmatpush1.msra.mxu0 0.0
        %641 = vmatprep.subr.mxu0 0.0
        %642 = vmatpush1.msra.mxu0 0.0
        %643 = vmatprep.subr.mxu0 0.0
        %644 = vmatpush1.msra.mxu0 0.0
        %645 = vmatprep.subr.mxu0 0.0
        %646 = vmatpush1.msra.mxu0 0.0
        %647 = vmatprep.subr.mxu0 0.0
        %648 = vmatpush1.msra.mxu0 0.0
        %649 = vmatprep.subr.mxu0 0.0
        %650 = vmatpush1.msra.mxu0 0.0
        %651 = vmatprep.subr.mxu0 0.0
        %652 = vmatpush1.msra.mxu0 0.0
        %653 = vmatprep.subr.mxu0 0.0
        %654 = vmatpush1.msra.mxu0 0.0
        %655 = vmatprep.subr.mxu0 0.0
        %656 = vmatpush1.msra.mxu0 0.0
        %657 = vmatprep.subr.mxu0 0.0
        %658 = vmatpush1.msra.mxu0 0.0
        %659 = vmatprep.subr.mxu0 0.0
        %660 = vmatpush1.msra.mxu0 0.0
        %661 = vmatprep.subr.mxu0 0.0
        %662 = vmatpush1.msra.mxu0 0.0
        %663 = vmatprep.subr.mxu0 0.0
        %664 = vmatpush1.msra.mxu0 0.0
        %665 = vmatprep.subr.mxu0 0.0
        %666 = vmatpush1.msra.mxu0 0.0
        %667 = vmatprep.subr.mxu0 0.0
        %668 = vmatpush1.msra.mxu0 %v389
        %669 = vmatprep.subr.mxu0 0.0
        %670 = vmatpush1.msra.mxu0 %v388
        %671 = vmatprep.subr.mxu0 0.0
        %672 = vmatpush2.msra.mxu0 0.0
        %673 = vmatprep.subr.mxu0 0.0
        %674 = vmatpush2.msra.mxu0 0.0
        %675 = vmatprep.subr.mxu0 0.0
        %676 = vmatpush2.msra.mxu0 0.0
        %677 = vmatprep.subr.mxu0 0.0
        %678 = vmatpush2.msra.mxu0 0.0
        %679 = vmatprep.subr.mxu0 0.0
        %680 = vmatpush2.msra.mxu0 0.0
        %681 = vmatprep.subr.mxu0 0.0
        %682 = vmatpush2.msra.mxu0 0.0
        %683 = vmatprep.subr.mxu0 0.0
        %684 = vmatpush2.msra.mxu0 0.0
        %685 = vmatprep.subr.mxu0 0.0
        %686 = vmatpush2.msra.mxu0 0.0
        %687 = vmatprep.subr.mxu0 0.0
        %688 = vmatpush2.msra.mxu0 0.0
        %689 = vmatprep.subr.mxu0 0.0
        %690 = vmatpush2.msra.mxu0 0.0
        %691 = vmatprep.subr.mxu0 0.0
        %692 = vmatpush2.msra.mxu0 0.0
        %693 = vmatprep.subr.mxu0 0.0
        %694 = vmatpush2.msra.mxu0 0.0
        %695 = vmatprep.subr.mxu0 0.0
        %696 = vmatpush2.msra.mxu0 0.0
        %697 = vmatprep.subr.mxu0 0.0
        %698 = vmatpush2.msra.mxu0 0.0
        %699 = vmatprep.subr.mxu0 0.0
        %700 = vmatpush2.msra.mxu0 0.0
        %701 = vmatprep.subr.mxu0 0.0
        %702 = vmatpush2.msra.mxu0 0.0
        %703 = vmatprep.mubr.f32.mxu0 0.0
        %704 = vmatmul.mubr.f32.gmra.mxu0 %v592
        %v705 = vpop.f32.mrf.mxu0
        %v706 = vadd.f32 %v512, %v705
        %v707 = vpop.f32.mrf.mxu0
        %708 = vmatprep.mubr.f32.mxu0 0.0
        %709 = vmatmul.mubr.f32.gmra.mxu0 %v595
        %v710 = vpop.f32.mrf.mxu0
        %v711 = vadd.f32 %v517, %v710
        %v712 = vpop.f32.mrf.mxu0
        %713 = vmatprep.mubr.f32.mxu0 0.0
        %714 = vmatmul.mubr.f32.gmra.mxu0 %v598
        %v715 = vpop.f32.mrf.mxu0
        %v716 = vadd.f32 %v522, %v715
        %v717 = vpop.f32.mrf.mxu0
        %718 = vmatprep.mubr.f32.mxu0 0.0
        %719 = vmatmul.mubr.f32.gmra.mxu0 %v601
        %v720 = vpop.f32.mrf.mxu0
        %v721 = vadd.f32 %v527, %v720
        %v722 = vpop.f32.mrf.mxu0
        %723 = vmatprep.mubr.f32.mxu0 0.0
        %724 = vmatmul.mubr.f32.gmra.mxu0 %v604
        %v725 = vpop.f32.mrf.mxu0
        %v726 = vadd.f32 %v532, %v725
        %v727 = vpop.f32.mrf.mxu0
        %728 = vmatprep.mubr.f32.mxu0 0.0
        %729 = vmatmul.mubr.f32.gmra.mxu0 %v607
        %v730 = vpop.f32.mrf.mxu0
        %v731 = vadd.f32 %v537, %v730
        %v732 = vpop.f32.mrf.mxu0
        %733 = vmatprep.mubr.f32.mxu0 0.0
        %734 = vmatmul.mubr.f32.gmra.mxu0 %v610
        %v735 = vpop.f32.mrf.mxu0
        %v736 = vadd.f32 %v542, %v735
        %v737 = vpop.f32.mrf.mxu0
        %738 = vmatprep.mubr.f32.mxu0 0.0
        %739 = vmatmul.mubr.f32.gmra.mxu0 %v613
        %v740 = vpop.f32.mrf.mxu0
        %v741 = vadd.f32 %v547, %v740
        %v742 = vpop.f32.mrf.mxu0
        %743 = vmatprep.mubr.f32.mxu0 0.0
        %744 = vmatmul.mubr.f32.gmra.mxu0 %v616
        %v745 = vpop.f32.mrf.mxu0
        %v746 = vadd.f32 %v552, %v745
        %v747 = vpop.f32.mrf.mxu0
        %748 = vmatprep.mubr.f32.mxu0 0.0
        %749 = vmatmul.mubr.f32.gmra.mxu0 %v619
        %v750 = vpop.f32.mrf.mxu0
        %v751 = vadd.f32 %v557, %v750
        %v752 = vpop.f32.mrf.mxu0
        %753 = vmatprep.mubr.f32.mxu0 0.0
        %754 = vmatmul.mubr.f32.gmra.mxu0 %v622
        %v755 = vpop.f32.mrf.mxu0
        %v756 = vadd.f32 %v562, %v755
        %v757 = vpop.f32.mrf.mxu0
        %758 = vmatprep.mubr.f32.mxu0 0.0
        %759 = vmatmul.mubr.f32.gmra.mxu0 %v625
        %v760 = vpop.f32.mrf.mxu0
        %v761 = vadd.f32 %v567, %v760
        %v762 = vpop.f32.mrf.mxu0
        %763 = vmatprep.mubr.f32.mxu0 0.0
        %764 = vmatmul.mubr.f32.gmra.mxu0 %v628
        %v765 = vpop.f32.mrf.mxu0
        %v766 = vadd.f32 %v572, %v765
        %v767 = vpop.f32.mrf.mxu0
        %768 = vmatprep.mubr.f32.mxu0 0.0
        %769 = vmatmul.mubr.f32.gmra.mxu0 %v631
        %v770 = vpop.f32.mrf.mxu0
        %v771 = vadd.f32 %v577, %v770
        %v772 = vpop.f32.mrf.mxu0
        %773 = vmatprep.mubr.f32.mxu0 0.0
        %774 = vmatmul.mubr.f32.gmra.mxu0 %v634
        %v775 = vpop.f32.mrf.mxu0
        %v776 = vadd.f32 %v582, %v775
        %v777 = vpop.f32.mrf.mxu0
        %778 = vmatprep.mubr.f32.mxu0 0.0
        %779 = vmatmul.mubr.f32.gmra.mxu0 %v637
        %v780 = vpop.f32.mrf.mxu0
        %v781 = vadd.f32 %v587, %v780
        %v782 = vpop.f32.mrf.mxu0
        %783 = vdwg.mxu0
        %v784 = vld [vmem:[%s4] sm:$0x1]
        %v786 = vlaneseq
        %v787 = vshrl.u32 %v786, 7
        %v788 = vsub.s32 0, %v787
        %v789 = vrot.slane %v784, %v788
        %v791 = vadd.f32 %v706, %v789
        %v792 = vadd.f32 %v711, %v789
        %v793 = vadd.f32 %v716, %v789
        %v794 = vadd.f32 %v721, %v789
        %v795 = vadd.f32 %v726, %v789
        %v796 = vadd.f32 %v731, %v789
        %v797 = vadd.f32 %v736, %v789
        %v798 = vadd.f32 %v741, %v789
        %v799 = vadd.f32 %v746, %v789
        %v800 = vadd.f32 %v751, %v789
        %v801 = vadd.f32 %v756, %v789
        %v802 = vadd.f32 %v761, %v789
        %v803 = vadd.f32 %v766, %v789
        %v804 = vadd.f32 %v771, %v789
        %v805 = vadd.f32 %v776, %v789
        %v806 = vadd.f32 %v781, %v789
        %v807 = vmax.f32 %v791, 0.0
        %v808 = vmax.f32 %v792, 0.0
        %v809 = vmax.f32 %v793, 0.0
        %v810 = vmax.f32 %v794, 0.0
        %v811 = vmax.f32 %v795, 0.0
        %v812 = vmax.f32 %v796, 0.0
        %v813 = vmax.f32 %v797, 0.0
        %v814 = vmax.f32 %v798, 0.0
        %v815 = vmax.f32 %v799, 0.0
        %v816 = vmax.f32 %v800, 0.0
        %v817 = vmax.f32 %v801, 0.0
        %v818 = vmax.f32 %v802, 0.0
        %v819 = vmax.f32 %v803, 0.0
        %v820 = vmax.f32 %v804, 0.0
        %v821 = vmax.f32 %v805, 0.0
        %v822 = vmax.f32 %v806, 0.0
        %v823 = vld [vmem:[%s5] sm:$0xff]
        %v824 = vld [vmem:[%s5 + $0x8] sm:$0xff]
        %v825 = vld [vmem:[%s5 + $0x10] sm:$0xff]
        %v826 = vld [vmem:[%s5 + $0x18] sm:$0xff]
        %v827 = vld [vmem:[%s5 + $0x20] sm:$0xff]
        %v828 = vld [vmem:[%s5 + $0x28] sm:$0xff]
        %v829 = vld [vmem:[%s5 + $0x30] sm:$0xff]
        %v830 = vld [vmem:[%s5 + $0x38] sm:$0xff]
        %v831 = vld [vmem:[%s5 + $0x40] sm:$0xff]
        %v832 = vld [vmem:[%s5 + $0x48] sm:$0xff]
        %v833 = vld [vmem:[%s5 + $0x50] sm:$0xff]
        %v834 = vld [vmem:[%s5 + $0x58] sm:$0xff]
        %v835 = vld [vmem:[%s5 + $0x60] sm:$0xff]
        %v836 = vld [vmem:[%s5 + $0x68] sm:$0xff]
        %v837 = vld [vmem:[%s5 + $0x70] sm:$0xff]
        %v838 = vld [vmem:[%s5 + $0x78] sm:$0xff]
        %v839 = vld [vmem:[%s6] sm:$0x1]
        %v841 = vlaneseq
        %v842 = vshrl.u32 %v841, 7
        %v843 = vsub.s32 0, %v842
        %v844 = vrot.slane %v839, %v843
        %846 = vmatprep.subr.mxu0 0.0
        %847 = vmatpush1.msra.mxu0 %v838
        %848 = vmatprep.subr.mxu0 0.0
        %849 = vmatpush1.msra.mxu0 %v837
        %850 = vmatprep.subr.mxu0 0.0
        %851 = vmatpush1.msra.mxu0 %v836
        %852 = vmatprep.subr.mxu0 0.0
        %853 = vmatpush1.msra.mxu0 %v835
        %854 = vmatprep.subr.mxu0 0.0
        %855 = vmatpush1.msra.mxu0 %v834
        %856 = vmatprep.subr.mxu0 0.0
        %857 = vmatpush1.msra.mxu0 %v833
        %858 = vmatprep.subr.mxu0 0.0
        %859 = vmatpush1.msra.mxu0 %v832
        %860 = vmatprep.subr.mxu0 0.0
        %861 = vmatpush1.msra.mxu0 %v831
        %862 = vmatprep.subr.mxu0 0.0
        %863 = vmatpush1.msra.mxu0 %v830
        %864 = vmatprep.subr.mxu0 0.0
        %865 = vmatpush1.msra.mxu0 %v829
        %866 = vmatprep.subr.mxu0 0.0
        %867 = vmatpush1.msra.mxu0 %v828
        %868 = vmatprep.subr.mxu0 0.0
        %869 = vmatpush1.msra.mxu0 %v827
        %870 = vmatprep.subr.mxu0 0.0
        %871 = vmatpush1.msra.mxu0 %v826
        %872 = vmatprep.subr.mxu0 0.0
        %873 = vmatpush1.msra.mxu0 %v825
        %874 = vmatprep.subr.mxu0 0.0
        %875 = vmatpush1.msra.mxu0 %v824
        %876 = vmatprep.subr.mxu0 0.0
        %877 = vmatpush1.msra.mxu0 %v823
        %878 = vmatprep.subr.mxu0 0.0
        %879 = vmatpush2.msra.mxu0 0.0
        %880 = vmatprep.subr.mxu0 0.0
        %881 = vmatpush2.msra.mxu0 0.0
        %882 = vmatprep.subr.mxu0 0.0
        %883 = vmatpush2.msra.mxu0 0.0
        %884 = vmatprep.subr.mxu0 0.0
        %885 = vmatpush2.msra.mxu0 0.0
        %886 = vmatprep.subr.mxu0 0.0
        %887 = vmatpush2.msra.mxu0 0.0
        %888 = vmatprep.subr.mxu0 0.0
        %889 = vmatpush2.msra.mxu0 0.0
        %890 = vmatprep.subr.mxu0 0.0
        %891 = vmatpush2.msra.mxu0 0.0
        %892 = vmatprep.subr.mxu0 0.0
        %893 = vmatpush2.msra.mxu0 0.0
        %894 = vmatprep.subr.mxu0 0.0
        %895 = vmatpush2.msra.mxu0 0.0
        %896 = vmatprep.subr.mxu0 0.0
        %897 = vmatpush2.msra.mxu0 0.0
        %898 = vmatprep.subr.mxu0 0.0
        %899 = vmatpush2.msra.mxu0 0.0
        %900 = vmatprep.subr.mxu0 0.0
        %901 = vmatpush2.msra.mxu0 0.0
        %902 = vmatprep.subr.mxu0 0.0
        %903 = vmatpush2.msra.mxu0 0.0
        %904 = vmatprep.subr.mxu0 0.0
        %905 = vmatpush2.msra.mxu0 0.0
        %906 = vmatprep.subr.mxu0 0.0
        %907 = vmatpush2.msra.mxu0 0.0
        %908 = vmatprep.subr.mxu0 0.0
        %909 = vmatpush2.msra.mxu0 0.0
        %910 = vmatprep.mubr.f32.mxu0 0.0
        %911 = vmatmul.mubr.f32.gmra.mxu0 %v807
        %v912 = vpop.f32.mrf.mxu0
        %v913 = vadd.f32 %v844, %v912
        %v914 = vpop.f32.mrf.mxu0
        %915 = vmatprep.mubr.f32.mxu0 0.0
        %916 = vmatmul.mubr.f32.gmra.mxu0 %v808
        %v917 = vpop.f32.mrf.mxu0
        %v918 = vadd.f32 %v844, %v917
        %v919 = vpop.f32.mrf.mxu0
        %920 = vmatprep.mubr.f32.mxu0 0.0
        %921 = vmatmul.mubr.f32.gmra.mxu0 %v809
        %v922 = vpop.f32.mrf.mxu0
        %v923 = vadd.f32 %v844, %v922
        %v924 = vpop.f32.mrf.mxu0
        %925 = vmatprep.mubr.f32.mxu0 0.0
        %926 = vmatmul.mubr.f32.gmra.mxu0 %v810
        %v927 = vpop.f32.mrf.mxu0
        %v928 = vadd.f32 %v844, %v927
        %v929 = vpop.f32.mrf.mxu0
        %930 = vmatprep.mubr.f32.mxu0 0.0
        %931 = vmatmul.mubr.f32.gmra.mxu0 %v811
        %v932 = vpop.f32.mrf.mxu0
        %v933 = vadd.f32 %v844, %v932
        %v934 = vpop.f32.mrf.mxu0
        %935 = vmatprep.mubr.f32.mxu0 0.0
        %936 = vmatmul.mubr.f32.gmra.mxu0 %v812
        %v937 = vpop.f32.mrf.mxu0
        %v938 = vadd.f32 %v844, %v937
        %v939 = vpop.f32.mrf.mxu0
        %940 = vmatprep.mubr.f32.mxu0 0.0
        %941 = vmatmul.mubr.f32.gmra.mxu0 %v813
        %v942 = vpop.f32.mrf.mxu0
        %v943 = vadd.f32 %v844, %v942
        %v944 = vpop.f32.mrf.mxu0
        %945 = vmatprep.mubr.f32.mxu0 0.0
        %946 = vmatmul.mubr.f32.gmra.mxu0 %v814
        %v947 = vpop.f32.mrf.mxu0
        %v948 = vadd.f32 %v844, %v947
        %v949 = vpop.f32.mrf.mxu0
        %950 = vmatprep.mubr.f32.mxu0 0.0
        %951 = vmatmul.mubr.f32.gmra.mxu0 %v815
        %v952 = vpop.f32.mrf.mxu0
        %v953 = vadd.f32 %v844, %v952
        %v954 = vpop.f32.mrf.mxu0
        %955 = vmatprep.mubr.f32.mxu0 0.0
        %956 = vmatmul.mubr.f32.gmra.mxu0 %v816
        %v957 = vpop.f32.mrf.mxu0
        %v958 = vadd.f32 %v844, %v957
        %v959 = vpop.f32.mrf.mxu0
        %960 = vmatprep.mubr.f32.mxu0 0.0
        %961 = vmatmul.mubr.f32.gmra.mxu0 %v817
        %v962 = vpop.f32.mrf.mxu0
        %v963 = vadd.f32 %v844, %v962
        %v964 = vpop.f32.mrf.mxu0
        %965 = vmatprep.mubr.f32.mxu0 0.0
        %966 = vmatmul.mubr.f32.gmra.mxu0 %v818
        %v967 = vpop.f32.mrf.mxu0
        %v968 = vadd.f32 %v844, %v967
        %v969 = vpop.f32.mrf.mxu0
        %970 = vmatprep.mubr.f32.mxu0 0.0
        %971 = vmatmul.mubr.f32.gmra.mxu0 %v819
        %v972 = vpop.f32.mrf.mxu0
        %v973 = vadd.f32 %v844, %v972
        %v974 = vpop.f32.mrf.mxu0
        %975 = vmatprep.mubr.f32.mxu0 0.0
        %976 = vmatmul.mubr.f32.gmra.mxu0 %v820
        %v977 = vpop.f32.mrf.mxu0
        %v978 = vadd.f32 %v844, %v977
        %v979 = vpop.f32.mrf.mxu0
        %980 = vmatprep.mubr.f32.mxu0 0.0
        %981 = vmatmul.mubr.f32.gmra.mxu0 %v821
        %v982 = vpop.f32.mrf.mxu0
        %v983 = vadd.f32 %v844, %v982
        %v984 = vpop.f32.mrf.mxu0
        %985 = vmatprep.mubr.f32.mxu0 0.0
        %986 = vmatmul.mubr.f32.gmra.mxu0 %v822
        %v987 = vpop.f32.mrf.mxu0
        %v988 = vadd.f32 %v844, %v987
        %v989 = vpop.f32.mrf.mxu0
        %990 = vdwg.mxu0
        %v991 = vmax.f32 %v913, 0.0
        %v992 = vmax.f32 %v918, 0.0
        %v993 = vmax.f32 %v923, 0.0
        %v994 = vmax.f32 %v928, 0.0
        %v995 = vmax.f32 %v933, 0.0
        %v996 = vmax.f32 %v938, 0.0
        %v997 = vmax.f32 %v943, 0.0
        %v998 = vmax.f32 %v948, 0.0
        %v999 = vmax.f32 %v953, 0.0
        %v1000 = vmax.f32 %v958, 0.0
        %v1001 = vmax.f32 %v963, 0.0
        %v1002 = vmax.f32 %v968, 0.0
        %v1003 = vmax.f32 %v973, 0.0
        %v1004 = vmax.f32 %v978, 0.0
        %v1005 = vmax.f32 %v983, 0.0
        %v1006 = vmax.f32 %v988, 0.0
        %v1007 = vld [vmem:[%s7] sm:$0xff]
        %v1008 = vld [vmem:[%s7 + $0x8] sm:$0xff]
        %v1009 = vld [vmem:[%s7 + $0x10] sm:$0xff]
        %v1010 = vld [vmem:[%s7 + $0x18] sm:$0xff]
        %v1011 = vld [vmem:[%s7 + $0x20] sm:$0xff]
        %v1012 = vld [vmem:[%s7 + $0x28] sm:$0xff]
        %v1013 = vld [vmem:[%s7 + $0x30] sm:$0xff]
        %v1014 = vld [vmem:[%s7 + $0x38] sm:$0xff]
        %v1015 = vld [vmem:[%s7 + $0x40] sm:$0xff]
        %v1016 = vld [vmem:[%s7 + $0x48] sm:$0xff]
        %v1017 = vld [vmem:[%s7 + $0x50] sm:$0xff]
        %v1018 = vld [vmem:[%s7 + $0x58] sm:$0xff]
        %v1019 = vld [vmem:[%s7 + $0x60] sm:$0xff]
        %v1020 = vld [vmem:[%s7 + $0x68] sm:$0xff]
        %v1021 = vld [vmem:[%s7 + $0x70] sm:$0xff]
        %v1022 = vld [vmem:[%s7 + $0x78] sm:$0xff]
        %v1023 = vld [vmem:[%s8] sm:$0x1]
        %v1025 = vlaneseq
        %v1026 = vshrl.u32 %v1025, 7
        %v1027 = vsub.s32 0, %v1026
        %v1028 = vrot.slane %v1023, %v1027
        %1030 = vmatprep.subr.mxu0 0.0
        %1031 = vmatpush1.msra.mxu0 %v1022
        %1032 = vmatprep.subr.mxu0 0.0
        %1033 = vmatpush1.msra.mxu0 %v1021
        %1034 = vmatprep.subr.mxu0 0.0
        %1035 = vmatpush1.msra.mxu0 %v1020
        %1036 = vmatprep.subr.mxu0 0.0
        %1037 = vmatpush1.msra.mxu0 %v1019
        %1038 = vmatprep.subr.mxu0 0.0
        %1039 = vmatpush1.msra.mxu0 %v1018
        %1040 = vmatprep.subr.mxu0 0.0
        %1041 = vmatpush1.msra.mxu0 %v1017
        %1042 = vmatprep.subr.mxu0 0.0
        %1043 = vmatpush1.msra.mxu0 %v1016
        %1044 = vmatprep.subr.mxu0 0.0
        %1045 = vmatpush1.msra.mxu0 %v1015
        %1046 = vmatprep.subr.mxu0 0.0
        %1047 = vmatpush1.msra.mxu0 %v1014
        %1048 = vmatprep.subr.mxu0 0.0
        %1049 = vmatpush1.msra.mxu0 %v1013
        %1050 = vmatprep.subr.mxu0 0.0
        %1051 = vmatpush1.msra.mxu0 %v1012
        %1052 = vmatprep.subr.mxu0 0.0
        %1053 = vmatpush1.msra.mxu0 %v1011
        %1054 = vmatprep.subr.mxu0 0.0
        %1055 = vmatpush1.msra.mxu0 %v1010
        %1056 = vmatprep.subr.mxu0 0.0
        %1057 = vmatpush1.msra.mxu0 %v1009
        %1058 = vmatprep.subr.mxu0 0.0
        %1059 = vmatpush1.msra.mxu0 %v1008
        %1060 = vmatprep.subr.mxu0 0.0
        %1061 = vmatpush1.msra.mxu0 %v1007
        %1062 = vmatprep.subr.mxu0 0.0
        %1063 = vmatpush2.msra.mxu0 0.0
        %1064 = vmatprep.subr.mxu0 0.0
        %1065 = vmatpush2.msra.mxu0 0.0
        %1066 = vmatprep.subr.mxu0 0.0
        %1067 = vmatpush2.msra.mxu0 0.0
        %1068 = vmatprep.subr.mxu0 0.0
        %1069 = vmatpush2.msra.mxu0 0.0
        %1070 = vmatprep.subr.mxu0 0.0
        %1071 = vmatpush2.msra.mxu0 0.0
        %1072 = vmatprep.subr.mxu0 0.0
        %1073 = vmatpush2.msra.mxu0 0.0
        %1074 = vmatprep.subr.mxu0 0.0
        %1075 = vmatpush2.msra.mxu0 0.0
        %1076 = vmatprep.subr.mxu0 0.0
        %1077 = vmatpush2.msra.mxu0 0.0
        %1078 = vmatprep.subr.mxu0 0.0
        %1079 = vmatpush2.msra.mxu0 0.0
        %1080 = vmatprep.subr.mxu0 0.0
        %1081 = vmatpush2.msra.mxu0 0.0
        %1082 = vmatprep.subr.mxu0 0.0
        %1083 = vmatpush2.msra.mxu0 0.0
        %1084 = vmatprep.subr.mxu0 0.0
        %1085 = vmatpush2.msra.mxu0 0.0
        %1086 = vmatprep.subr.mxu0 0.0
        %1087 = vmatpush2.msra.mxu0 0.0
        %1088 = vmatprep.subr.mxu0 0.0
        %1089 = vmatpush2.msra.mxu0 0.0
        %1090 = vmatprep.subr.mxu0 0.0
        %1091 = vmatpush2.msra.mxu0 0.0
        %1092 = vmatprep.subr.mxu0 0.0
        %1093 = vmatpush2.msra.mxu0 0.0
        %1094 = vmatprep.mubr.f32.mxu0 0.0
        %1095 = vmatmul.mubr.f32.gmra.mxu0 %v991
        %v1096 = vpop.f32.mrf.mxu0
        %v1097 = vadd.f32 %v1028, %v1096
        %v1098 = vpop.f32.mrf.mxu0
        %1099 = vmatprep.mubr.f32.mxu0 0.0
        %1100 = vmatmul.mubr.f32.gmra.mxu0 %v992
        %v1101 = vpop.f32.mrf.mxu0
        %v1102 = vadd.f32 %v1028, %v1101
        %v1103 = vpop.f32.mrf.mxu0
        %1104 = vmatprep.mubr.f32.mxu0 0.0
        %1105 = vmatmul.mubr.f32.gmra.mxu0 %v993
        %v1106 = vpop.f32.mrf.mxu0
        %v1107 = vadd.f32 %v1028, %v1106
        %v1108 = vpop.f32.mrf.mxu0
        %1109 = vmatprep.mubr.f32.mxu0 0.0
        %1110 = vmatmul.mubr.f32.gmra.mxu0 %v994
        %v1111 = vpop.f32.mrf.mxu0
        %v1112 = vadd.f32 %v1028, %v1111
        %v1113 = vpop.f32.mrf.mxu0
        %1114 = vmatprep.mubr.f32.mxu0 0.0
        %1115 = vmatmul.mubr.f32.gmra.mxu0 %v995
        %v1116 = vpop.f32.mrf.mxu0
        %v1117 = vadd.f32 %v1028, %v1116
        %v1118 = vpop.f32.mrf.mxu0
        %1119 = vmatprep.mubr.f32.mxu0 0.0
        %1120 = vmatmul.mubr.f32.gmra.mxu0 %v996
        %v1121 = vpop.f32.mrf.mxu0
        %v1122 = vadd.f32 %v1028, %v1121
        %v1123 = vpop.f32.mrf.mxu0
        %1124 = vmatprep.mubr.f32.mxu0 0.0
        %1125 = vmatmul.mubr.f32.gmra.mxu0 %v997
        %v1126 = vpop.f32.mrf.mxu0
        %v1127 = vadd.f32 %v1028, %v1126
        %v1128 = vpop.f32.mrf.mxu0
        %1129 = vmatprep.mubr.f32.mxu0 0.0
        %1130 = vmatmul.mubr.f32.gmra.mxu0 %v998
        %v1131 = vpop.f32.mrf.mxu0
        %v1132 = vadd.f32 %v1028, %v1131
        %v1133 = vpop.f32.mrf.mxu0
        %1134 = vmatprep.mubr.f32.mxu0 0.0
        %1135 = vmatmul.mubr.f32.gmra.mxu0 %v999
        %v1136 = vpop.f32.mrf.mxu0
        %v1137 = vadd.f32 %v1028, %v1136
        %v1138 = vpop.f32.mrf.mxu0
        %1139 = vmatprep.mubr.f32.mxu0 0.0
        %1140 = vmatmul.mubr.f32.gmra.mxu0 %v1000
        %v1141 = vpop.f32.mrf.mxu0
        %v1142 = vadd.f32 %v1028, %v1141
        %v1143 = vpop.f32.mrf.mxu0
        %1144 = vmatprep.mubr.f32.mxu0 0.0
        %1145 = vmatmul.mubr.f32.gmra.mxu0 %v1001
        %v1146 = vpop.f32.mrf.mxu0
        %v1147 = vadd.f32 %v1028, %v1146
        %v1148 = vpop.f32.mrf.mxu0
        %1149 = vmatprep.mubr.f32.mxu0 0.0
        %1150 = vmatmul.mubr.f32.gmra.mxu0 %v1002
        %v1151 = vpop.f32.mrf.mxu0
        %v1152 = vadd.f32 %v1028, %v1151
        %v1153 = vpop.f32.mrf.mxu0
        %1154 = vmatprep.mubr.f32.mxu0 0.0
        %1155 = vmatmul.mubr.f32.gmra.mxu0 %v1003
        %v1156 = vpop.f32.mrf.mxu0
        %v1157 = vadd.f32 %v1028, %v1156
        %v1158 = vpop.f32.mrf.mxu0
        %1159 = vmatprep.mubr.f32.mxu0 0.0
        %1160 = vmatmul.mubr.f32.gmra.mxu0 %v1004
        %v1161 = vpop.f32.mrf.mxu0
        %v1162 = vadd.f32 %v1028, %v1161
        %v1163 = vpop.f32.mrf.mxu0
        %1164 = vmatprep.mubr.f32.mxu0 0.0
        %1165 = vmatmul.mubr.f32.gmra.mxu0 %v1005
        %v1166 = vpop.f32.mrf.mxu0
        %v1167 = vadd.f32 %v1028, %v1166
        %v1168 = vpop.f32.mrf.mxu0
        %1169 = vmatprep.mubr.f32.mxu0 0.0
        %1170 = vmatmul.mubr.f32.gmra.mxu0 %v1006
        %v1171 = vpop.f32.mrf.mxu0
        %v1172 = vadd.f32 %v1028, %v1171
        %v1173 = vpop.f32.mrf.mxu0
        %1174 = vdwg.mxu0
        %1175 = vst [vmem:[%s342] sm:$0xff] %v1097
        %1176 = vst [vmem:[%s342 + $0x8] sm:$0xff] %v1102
        %1177 = vst [vmem:[%s342 + $0x10] sm:$0xff] %v1107
        %1178 = vst [vmem:[%s342 + $0x18] sm:$0xff] %v1112
        %1179 = vst [vmem:[%s342 + $0x20] sm:$0xff] %v1117
        %1180 = vst [vmem:[%s342 + $0x28] sm:$0xff] %v1122
        %1181 = vst [vmem:[%s342 + $0x30] sm:$0xff] %v1127
        %1182 = vst [vmem:[%s342 + $0x38] sm:$0xff] %v1132
        %1183 = vst [vmem:[%s342 + $0x40] sm:$0xff] %v1137
        %1184 = vst [vmem:[%s342 + $0x48] sm:$0xff] %v1142
        %1185 = vst [vmem:[%s342 + $0x50] sm:$0xff] %v1147
        %1186 = vst [vmem:[%s342 + $0x58] sm:$0xff] %v1152
        %1187 = vst [vmem:[%s342 + $0x60] sm:$0xff] %v1157
        %1188 = vst [vmem:[%s342 + $0x68] sm:$0xff] %v1162
        %1189 = vst [vmem:[%s342 + $0x70] sm:$0xff] %v1167
        %1190 = vst [vmem:[%s342 + $0x78] sm:$0xff] %v1172
        %s1191 = sand.u32 %s230, 1
        %s1192 = scalar_lea.sflag [#allocation3], %s1191
        %s1193 = sand.u32 %s230, 1
        %s1194 = smul.addr %s1193, 128
        %s1195 = scalar_lea.vmem [#allocation2], %s1194
        // Predicated region
        $region57: #{tpu_custom_call.1} parent=55 // pred_check
          %p1196 = pneg %p240
        $region58: #{tpu_custom_call.1} parent=55 // pred_check_branch
          %1198 = sbr.rel (%p1196) target = $region60
        $region59: #{tpu_custom_call.1} parent=55 // pred_region
          %s1199 = smul.u32 16, %s23
          %s1201 = ssub.s32 2048, 2048
          %1202 = vsyncadd %s1192, %s1201
          %s1203 = smul.addr %s1199, 128
          %s1204 = scalar_lea.hbm %s9, %s1203
          %s1205 = sshll.u32 %s1195, 4
          %s1206 = int_to_ptr.vmem [resolvable:$true] %s1205
          %1211 = dma.vmem_to_hbm [thread:$0]  %s1206, 2048, %s1204, %s1192, 128, 128, 8
        $region60: #{tpu_custom_call.1} parent=55 // pred_fallthru
          _
      $region56: #{tpu_custom_call.1} parent=5 // pred_fallthru
        _
      %p1212 = scmp.le.s32.totalorder 2, %s18
      // Predicated region
      $region61: #{tpu_custom_call.1} parent=5 // pred_check
        %p1213 = pneg %p1212
      $region62: #{tpu_custom_call.1} parent=5 // pred_check_branch
        %1215 = sbr.rel (%p1213) target = $region64
      $region63: #{tpu_custom_call.1} parent=5 // pred_region
        %s1216 = ssub.s32 %s18, 2
        // Predicated region
        $region65: #{tpu_custom_call.1} parent=63 // pred_check
          %p1217 = pneg %p246
        $region66: #{tpu_custom_call.1} parent=63 // pred_check_branch
          %1219 = sbr.rel (%p1217) target = $region68
        $region67: #{tpu_custom_call.1} parent=63 // pred_region
          %s1220 = sand.u32 %s231, 1
          %s1221 = scalar_lea.sflag [#allocation3], %s1220
          %s1222 = sand.u32 %s231, 1
          %s1223 = smul.addr %s1222, 128
          %s1224 = scalar_lea.vmem [#allocation2], %s1223
          %1225 = dma.done %s1221, 2048
        $region68: #{tpu_custom_call.1} parent=63 // pred_fallthru
          _
      $region64: #{tpu_custom_call.1} parent=5 // pred_fallthru
        _
    $region6: #{tpu_custom_call.1} parent=1 // loop_footer
      %s22 = sadd.s32 1, %s18
    $region7: #{tpu_custom_call.1} parent=1 // loop_footer_branch
      %17 = sbr.rel target = $region3
    $region8: #{tpu_custom_call.1} parent=1 // loop_exit
      _
    %1226 = vsyncpa [#allocation3], 1
    %s1227 = scalar_lea.sflag [#allocation3], 1
    %1228 = vsyncpa %s1227, 1

</llo_original>
